<compile_context>
chip_gen: v6e
topology: v6e:2x2x1
jax: 0.10.0
libtpu: 0.0.40
codegen_flags: <defaults>
</compile_context>

<pallas_src>
import math

import jax
import jax.numpy as jnp
from jax import lax
from jax.experimental import pallas as pl
from jax.experimental.pallas import tpu as pltpu


# ---------------------------------------------------------------------------
# Fused kernel (one grid step = one batch tile of size `bt` for BOTH heads)
#   x3_ref   : [bt, N, M]   features viewed as assets x hidden
#   feat_ref : [bt, D]      flat features (D = N*M)
#   a_ref    : [N, Pp]      one-hot of triu row index  (lane-padded, Pp % 128 == 0)
#   c_ref    : [N, Pp]      one-hot of triu col index  (lane-padded)
#   w_ref    : [D, Vp]      value-net weight (lane-padded)
#   b_ref    : [1, Vp]      value-net bias   (lane-padded)
#   pol_ref  : [bt, Pp]     triu(X X^T, k=1) per batch, lane-dense
#   val_ref  : [bt, Vp]     relu(features @ W + b), lane-dense
# ---------------------------------------------------------------------------
def _make_fused_kernel(bt):
    def kernel(x3_ref, feat_ref, a_ref, c_ref, w_ref, b_ref, pol_ref, val_ref):
        a = a_ref[...]
        c = c_ref[...]

        # --- policy head: per batch element (static unroll, bt <= 8) ---------
        for bb in range(bt):
            x = x3_ref[bb]                                      # [N, M]
            # S = X @ X^T : contract last dims of both operands (no transpose).
            s = lax.dot_general(
                x, x,
                dimension_numbers=(((1,), (1,)), ((), ())),
                preferred_element_type=jnp.float32)             # [N, N], symmetric
            # Triu(k=1) selection as matmul + masked sublane reduce:
            #   m1[j,p] = S[j, iu0[p]]  ;  L[p] = m1[iu1[p], p] = S[iu0[p], iu1[p]]
            m1 = jnp.dot(s, a, preferred_element_type=jnp.float32)   # [N, Pp]
            pol_ref[bb, :] = jnp.sum(m1 * c, axis=0)                 # [Pp]

        # --- value head: one batched MXU matmul for the whole tile -----------
        y = jnp.dot(feat_ref[...], w_ref[...],
                    preferred_element_type=jnp.float32) + b_ref[...]
        val_ref[...] = jnp.maximum(y, 0.0)

    return kernel


def pair_selection_fused(x3, features, a_sel, c_sel, w_pad, b_pad):
    """x3: [B,N,M], features: [B,D], a_sel/c_sel: [N,Pp], w_pad: [D,Vp], b_pad: [1,Vp]
    -> (pol_pad: [B,Pp], val_pad: [B,Vp])."""
    B, N, M = x3.shape
    D = features.shape[1]
    Pp = a_sel.shape[1]
    Vp = w_pad.shape[1]

    # Batch tile: whole batch per step for small B; cap static unroll at 8 and
    # tile so the "parallel" batch axis can shard across TensorCores for big B.
    bt = B if B <= 8 else math.gcd(B, 8)
    grid = (B // bt,)

    return pl.pallas_call(
        _make_fused_kernel(bt),
        out_shape=(
            jax.ShapeDtypeStruct((B, Pp), jnp.float32),
            jax.ShapeDtypeStruct((B, Vp), jnp.float32),
        ),
        grid=grid,
        in_specs=[
            pl.BlockSpec((bt, N, M), lambda i: (i, 0, 0)),
            pl.BlockSpec((bt, D), lambda i: (i, 0)),
            pl.BlockSpec((N, Pp), lambda i: (0, 0)),
            pl.BlockSpec((N, Pp), lambda i: (0, 0)),
            pl.BlockSpec((D, Vp), lambda i: (0, 0)),
            pl.BlockSpec((1, Vp), lambda i: (0, 0)),
        ],
        out_specs=(
            pl.BlockSpec((bt, Pp), lambda i: (i, 0)),
            pl.BlockSpec((bt, Vp), lambda i: (i, 0)),
        ),
        compiler_params=pltpu.CompilerParams(
            dimension_semantics=("parallel",)),
    )(x3, features, a_sel, c_sel, w_pad, b_pad)


# ---------------------------------------------------------------------------
# Module wrapper
# ---------------------------------------------------------------------------
class PairSelectionNetworkPallas:
    """policy='parallel_selection' variant of PairSelectionNetwork."""

    def __init__(self, feature_dim, hidden_dim, asset_num,
                 last_layer_dim_pi=60, last_layer_dim_vf=64, seed=0):
        self.hidden_dim = hidden_dim
        self.asset_num = asset_num
        self.feature_dim = feature_dim
        self.latent_dim_vf = last_layer_dim_vf

        N = asset_num
        V = last_layer_dim_vf
        self.latent_dim_pi = N * (N - 1) // 2   # actual triu vector length

        # Deterministic init of the value-net Linear (PyTorch-style uniform).
        key = jax.random.PRNGKey(seed)
        kw, kb = jax.random.split(key)
        fan_in = hidden_dim * asset_num
        bound = 1.0 / (fan_in ** 0.5)
        # stored transposed: [D, V] so the kernel does x @ W
        self.w = jax.random.uniform(kw, (fan_in, V), jnp.float32, -bound, bound)
        self.b = jax.random.uniform(kb, (1, V), jnp.float32, -bound, bound)

        # Lane-pad value head to a multiple of 128 (unmasked stores/DMAs).
        self.Vp = ((V + 127) // 128) * 128
        self.w_pad = jnp.pad(self.w, ((0, 0), (0, self.Vp - V)))
        self.b_pad = jnp.pad(self.b, ((0, 0), (0, self.Vp - V)))

        # Triu(k=1) selection matrices (matches th.triu_indices ordering),
        # lane-padded to Pp (padded columns are all-zero -> output 0, sliced off).
        iu0, iu1 = jnp.triu_indices(N, k=1)
        P = self.latent_dim_pi
        self.Pp = ((P + 127) // 128) * 128
        a_sel = jax.nn.one_hot(iu0, N, dtype=jnp.float32).T     # [N, P]
        c_sel = jax.nn.one_hot(iu1, N, dtype=jnp.float32).T     # [N, P]
        self.a_sel = jnp.pad(a_sel, ((0, 0), (0, self.Pp - P)))
        self.c_sel = jnp.pad(c_sel, ((0, 0), (0, self.Pp - P)))

        # Jit the whole forward so reshape + kernel + output slices are one dispatch.
        self._fwd = jax.jit(self._forward_impl)

    def _forward_impl(self, features):
        B = features.shape[0]
        N = self.asset_num
        x3 = features.reshape(B, N, self.hidden_dim)
        pol_pad, val_pad = pair_selection_fused(
            x3, features, self.a_sel, self.c_sel, self.w_pad, self.b_pad)
        return pol_pad[:, :self.latent_dim_pi], val_pad[:, :self.latent_dim_vf]

    def forward(self, features):
        """features: [B, asset_num * hidden_dim] (float32)."""
        return self._fwd(features)


if __name__ == "__main__":
    # Small shapes consistent with the module.
    batch = 2
    asset_num = 16
    hidden_dim = 32
    feature_dim = asset_num * hidden_dim          # 512
    last_layer_dim_vf = 64

    key = jax.random.PRNGKey(0)
    features = jax.random.normal(key, (batch, feature_dim), jnp.float32)

    net = PairSelectionNetworkPallas(
        feature_dim, hidden_dim, asset_num,
        last_layer_dim_vf=last_layer_dim_vf, seed=0)

    latent_policy, latent_value = net.forward(features)
    jax.block_until_ready(latent_policy)
    jax.block_until_ready(latent_value)

    # Sanity vs. pure-JAX reference (same semantics as the PyTorch module).
    x3 = features.reshape(batch, asset_num, hidden_dim)
    sat_ref = jnp.einsum("bnm,bkm->bnk", x3, x3)
    iu0, iu1 = jnp.triu_indices(asset_num, k=1)
    pol_ref = sat_ref[:, iu0, iu1]
    val_ref = jnp.maximum(features @ net.w + net.b, 0.0)

    assert latent_policy.shape == (batch, asset_num * (asset_num - 1) // 2)
    assert latent_value.shape == (batch, last_layer_dim_vf)
    assert jnp.allclose(latent_policy, pol_ref, atol=1e-4, rtol=1e-4)
    assert jnp.allclose(latent_value, val_ref, atol=1e-4, rtol=1e-4)

    print("KERNEL_OK")
</pallas_src>

<mosaic_0001>
module attributes {stable_mosaic.version = 11 : i64} {
  func.func @kernel(%arg0: i32, %arg1: memref<2x16x32xf32, #tpu.memory_space<vmem>>, %arg2: memref<2x512xf32, #tpu.memory_space<vmem>>, %arg3: memref<16x128xf32, #tpu.memory_space<vmem>>, %arg4: memref<16x128xf32, #tpu.memory_space<vmem>>, %arg5: memref<512x128xf32, #tpu.memory_space<vmem>>, %arg6: memref<1x128xf32, #tpu.memory_space<vmem>>, %arg7: memref<2x128xf32, #tpu.memory_space<vmem>>, %arg8: memref<2x128xf32, #tpu.memory_space<vmem>>) attributes {dimension_semantics = [#tpu.dimension_semantics<parallel>], iteration_bounds = array<i64: 1>, scalar_prefetch = 0 : i64, scratch_operands = 0 : i64, tpu.core_type = #tpu.core_type<tc>, window_params = [{transform_indices = @transform_0, window_bounds = array<i64: 2, 16, 32>}, {transform_indices = @transform_1, window_bounds = array<i64: 2, 512>}, {pipeline_mode = #tpu.pipeline_mode<synchronous>, transform_indices = @transform_2, window_bounds = array<i64: 16, 128>}, {pipeline_mode = #tpu.pipeline_mode<synchronous>, transform_indices = @transform_3, window_bounds = array<i64: 16, 128>}, {pipeline_mode = #tpu.pipeline_mode<synchronous>, transform_indices = @transform_4, window_bounds = array<i64: 512, 128>}, {pipeline_mode = #tpu.pipeline_mode<synchronous>, transform_indices = @transform_5, window_bounds = array<i64: 1, 128>}, {transform_indices = @transform_6, window_bounds = array<i64: 2, 128>}, {transform_indices = @transform_7, window_bounds = array<i64: 2, 128>}]} {
    %c0 = arith.constant 0 : index
    %c0_0 = arith.constant 0 : index
    %0 = vector.load %arg3[%c0, %c0_0] : memref<16x128xf32, #tpu.memory_space<vmem>>, vector<16x128xf32>
    %c0_1 = arith.constant 0 : index
    %c0_2 = arith.constant 0 : index
    %1 = vector.load %arg4[%c0_1, %c0_2] : memref<16x128xf32, #tpu.memory_space<vmem>>, vector<16x128xf32>
    %c0_3 = arith.constant 0 : index
    %c0_4 = arith.constant 0 : index
    %c0_5 = arith.constant 0 : index
    %2 = vector.load %arg1[%c0_3, %c0_4, %c0_5] : memref<2x16x32xf32, #tpu.memory_space<vmem>>, vector<1x16x32xf32>
    %3 = vector.shape_cast %2 : vector<1x16x32xf32> to vector<16x32xf32>
    %cst = arith.constant dense<0.000000e+00> : vector<16x16xf32>
    %4 = tpu.matmul %3, %3, %cst {dimension_numbers = #tpu.dot_dimension_numbers<[1], [1], [0], [0], [0, 0, 1, 0], [], []>} : vector<16x32xf32>, vector<16x32xf32>, vector<16x16xf32> -> vector<16x16xf32>
    %cst_6 = arith.constant dense<0.000000e+00> : vector<16x128xf32>
    %5 = tpu.matmul %4, %0, %cst_6 {dimension_numbers = #tpu.dot_dimension_numbers<[1], [0], [0], [1], [0, 0, 1, 1], [], []>} : vector<16x16xf32>, vector<16x128xf32>, vector<16x128xf32> -> vector<16x128xf32>
    %6 = arith.mulf %5, %1 : vector<16x128xf32>
    %cst_7 = arith.constant dense<0.000000e+00> : vector<128xf32>
    %7 = vector.multi_reduction <add>, %6, %cst_7 [0] : vector<16x128xf32> to vector<128xf32>
    %c0_8 = arith.constant 0 : index
    %c0_9 = arith.constant 0 : index
    %8 = vector.load %arg7[%c0_8, %c0_9] : memref<2x128xf32, #tpu.memory_space<vmem>>, vector<1x128xf32>
    %9 = vector.shape_cast %8 : vector<1x128xf32> to vector<128xf32>
    %10 = vector.shape_cast %7 : vector<128xf32> to vector<1x128xf32>
    tpu.vector_store %arg7[%c0_8, %c0_9], %10 {strides = array<i32>} : memref<2x128xf32, #tpu.memory_space<vmem>>, vector<1x128xf32>,
    %c1 = arith.constant 1 : index
    %c0_10 = arith.constant 0 : index
    %c0_11 = arith.constant 0 : index
    %11 = vector.load %arg1[%c1, %c0_10, %c0_11] : memref<2x16x32xf32, #tpu.memory_space<vmem>>, vector<1x16x32xf32>
    %12 = vector.shape_cast %11 : vector<1x16x32xf32> to vector<16x32xf32>
    %cst_12 = arith.constant dense<0.000000e+00> : vector<16x16xf32>
    %13 = tpu.matmul %12, %12, %cst_12 {dimension_numbers = #tpu.dot_dimension_numbers<[1], [1], [0], [0], [0, 0, 1, 0], [], []>} : vector<16x32xf32>, vector<16x32xf32>, vector<16x16xf32> -> vector<16x16xf32>
    %cst_13 = arith.constant dense<0.000000e+00> : vector<16x128xf32>
    %14 = tpu.matmul %13, %0, %cst_13 {dimension_numbers = #tpu.dot_dimension_numbers<[1], [0], [0], [1], [0, 0, 1, 1], [], []>} : vector<16x16xf32>, vector<16x128xf32>, vector<16x128xf32> -> vector<16x128xf32>
    %15 = arith.mulf %14, %1 : vector<16x128xf32>
    %cst_14 = arith.constant dense<0.000000e+00> : vector<128xf32>
    %16 = vector.multi_reduction <add>, %15, %cst_14 [0] : vector<16x128xf32> to vector<128xf32>
    %c1_15 = arith.constant 1 : index
    %c0_16 = arith.constant 0 : index
    %17 = vector.load %arg7[%c1_15, %c0_16] : memref<2x128xf32, #tpu.memory_space<vmem>>, vector<1x128xf32>
    %18 = vector.shape_cast %17 : vector<1x128xf32> to vector<128xf32>
    %19 = vector.shape_cast %16 : vector<128xf32> to vector<1x128xf32>
    tpu.vector_store %arg7[%c1_15, %c0_16], %19 {strides = array<i32>} : memref<2x128xf32, #tpu.memory_space<vmem>>, vector<1x128xf32>,
    %c0_17 = arith.constant 0 : index
    %c0_18 = arith.constant 0 : index
    %20 = vector.load %arg2[%c0_17, %c0_18] : memref<2x512xf32, #tpu.memory_space<vmem>>, vector<2x512xf32>
    %c0_19 = arith.constant 0 : index
    %c0_20 = arith.constant 0 : index
    %21 = vector.load %arg5[%c0_19, %c0_20] : memref<512x128xf32, #tpu.memory_space<vmem>>, vector<512x128xf32>
    %cst_21 = arith.constant dense<0.000000e+00> : vector<2x128xf32>
    %22 = tpu.matmul %20, %21, %cst_21 {dimension_numbers = #tpu.dot_dimension_numbers<[1], [0], [0], [1], [0, 0, 1, 1], [], []>} : vector<2x512xf32>, vector<512x128xf32>, vector<2x128xf32> -> vector<2x128xf32>
    %c0_22 = arith.constant 0 : index
    %c0_23 = arith.constant 0 : index
    %23 = vector.load %arg6[%c0_22, %c0_23] : memref<1x128xf32, #tpu.memory_space<vmem>>, vector<1x128xf32>
    %24 = vector.broadcast %23 : vector<1x128xf32> to vector<2x128xf32>
    %25 = arith.addf %22, %24 : vector<2x128xf32>
    %cst_24 = arith.constant 0.000000e+00 : f32
    %26 = vector.broadcast %cst_24 : f32 to vector<2x128xf32>
    %27 = arith.maximumf %25, %26 : vector<2x128xf32>
    %c0_25 = arith.constant 0 : index
    %c0_26 = arith.constant 0 : index
    %28 = vector.load %arg8[%c0_25, %c0_26] : memref<2x128xf32, #tpu.memory_space<vmem>>, vector<2x128xf32>
    tpu.vector_store %arg8[%c0_25, %c0_26], %27 {strides = array<i32>} : memref<2x128xf32, #tpu.memory_space<vmem>>, vector<2x128xf32>,
    return
  }
  func.func @transform_0(%arg0: i32) -> (i32, i32, i32) {
    %c0_i32 = arith.constant 0 : i32
    %c0_i32_0 = arith.constant 0 : i32
    %c0_i32_1 = arith.constant 0 : i32
    return %arg0, %c0_i32, %c0_i32_0 : i32, i32, i32
  }
  func.func @transform_1(%arg0: i32) -> (i32, i32) {
    %c0_i32 = arith.constant 0 : i32
    %c0_i32_0 = arith.constant 0 : i32
    return %arg0, %c0_i32 : i32, i32
  }
  func.func @transform_2(%arg0: i32) -> (i32, i32) {
    %c0_i32 = arith.constant 0 : i32
    %c0_i32_0 = arith.constant 0 : i32
    %c0_i32_1 = arith.constant 0 : i32
    return %c0_i32, %c0_i32_0 : i32, i32
  }
  func.func @transform_3(%arg0: i32) -> (i32, i32) {
    %c0_i32 = arith.constant 0 : i32
    %c0_i32_0 = arith.constant 0 : i32
    %c0_i32_1 = arith.constant 0 : i32
    return %c0_i32, %c0_i32_0 : i32, i32
  }
  func.func @transform_4(%arg0: i32) -> (i32, i32) {
    %c0_i32 = arith.constant 0 : i32
    %c0_i32_0 = arith.constant 0 : i32
    %c0_i32_1 = arith.constant 0 : i32
    return %c0_i32, %c0_i32_0 : i32, i32
  }
  func.func @transform_5(%arg0: i32) -> (i32, i32) {
    %c0_i32 = arith.constant 0 : i32
    %c0_i32_0 = arith.constant 0 : i32
    %c0_i32_1 = arith.constant 0 : i32
    return %c0_i32, %c0_i32_0 : i32, i32
  }
  func.func @transform_6(%arg0: i32) -> (i32, i32) {
    %c0_i32 = arith.constant 0 : i32
    %c0_i32_0 = arith.constant 0 : i32
    return %arg0, %c0_i32 : i32, i32
  }
  func.func @transform_7(%arg0: i32) -> (i32, i32) {
    %c0_i32 = arith.constant 0 : i32
    %c0_i32_0 = arith.constant 0 : i32
    return %arg0, %c0_i32 : i32, i32
  }
}

</mosaic_0001>

<llo_original>
// kernel: _forward_impl.1
$region0: #{_forward_impl.1}
  #allocation0 [shape = 'u32[]', space=smem, size = 0x4, offset = 0x4, fixed_abs, tag = 'smem constant byte address 0x4 - core index']
  #allocation1 [shape = 'u32[144,128]{1,0:T(1,128)}', space=vmem, size = 0x12000, scoped, tag = 'internal scratch']
  %s0 = inlined_call_operand.vmem [shape: f32[2,16,32], index: 0, kind: input, shape index: {}]
  %s1 = inlined_call_operand.vmem [shape: f32[2,512], index: 1, kind: input, shape index: {}]
  %s2 = inlined_call_operand.vmem [shape: f32[16,128], index: 2, kind: input, shape index: {}]
  %s3 = inlined_call_operand.vmem [shape: f32[16,128], index: 3, kind: input, shape index: {}]
  %s4 = inlined_call_operand.hbm [shape: f32[512,128], index: 4, kind: input, shape index: {}]
  %s5 = inlined_call_operand.vmem [shape: f32[1,128], index: 5, kind: input, shape index: {}]
  %s6 = inlined_call_operand.hbm [shape: f32[2,128], index: 6, kind: output, shape index: {0}]
  %s7 = inlined_call_operand.hbm [shape: f32[2,128], index: 7, kind: output, shape index: {1}]
  %8 = xla_tuple %s6, %s7
  %s9 = sld [smem:[#allocation0]]
  $region46: #{_forward_impl.1} parent=0
    _
  %s11 = ssub.s32 1, %s9
  %s12 = scalar_select 0, %s11, %s9
  $region1: #{_forward_impl.1} parent=0
    #allocation2 [shape = 'u8[262144]{0}', space=vmem, size = 0x40000, scoped, tag = 'input window, operand 4, single buffered']
    #allocation3 [shape = 's32[1]{0}', space=sflag, size = 0x4, scoped, tag = 'scoped memory for _forward_impl.1']
    #allocation4 [shape = 's32[1]{0}', space=sflag, size = 0x4, scoped, tag = 'scoped memory for _forward_impl.1']
    #allocation5 [shape = 'u8[1024]{0}', space=vmem, size = 0x400, scoped, tag = 'output window, operand 0, single buffered']
    #allocation6 [shape = 'u8[1024]{0}', space=vmem, size = 0x400, scoped, tag = 'output window, operand 1, single buffered']
    #allocation7 [shape = 's32[1]{0}', space=sflag, size = 0x4, scoped, tag = 'scoped memory for _forward_impl.1']
    %13 = vsyncpa [#allocation3], 0
    %14 = vsyncpa [#allocation4], 0
    %15 = vsyncpa [#allocation7], 0
    // Predicated region
    $region2: #{_forward_impl.1} parent=1 // pred_check
      _
    $region3: #{_forward_impl.1} parent=1 // pred_check_branch
      %17 = sbr.rel (0) target = $region5
    $region4: #{_forward_impl.1} parent=1 // pred_region
      _
    $region5: #{_forward_impl.1} parent=1 // pred_fallthru
      _
    // Predicated region
    $region6: #{_forward_impl.1} parent=1 // pred_check
      _
    $region7: #{_forward_impl.1} parent=1 // pred_check_branch
      %19 = sbr.rel (0) target = $region9
    $region8: #{_forward_impl.1} parent=1 // pred_region
      _
    $region9: #{_forward_impl.1} parent=1 // pred_fallthru
      _
    // Predicated region
    $region10: #{_forward_impl.1} parent=1 // pred_check
      _
    $region11: #{_forward_impl.1} parent=1 // pred_check_branch
      %21 = sbr.rel (0) target = $region13
    $region12: #{_forward_impl.1} parent=1 // pred_region
      _
    $region13: #{_forward_impl.1} parent=1 // pred_fallthru
      _
    // Predicated region
    $region14: #{_forward_impl.1} parent=1 // pred_check
      _
    $region15: #{_forward_impl.1} parent=1 // pred_check_branch
      %23 = sbr.rel (0) target = $region17
    $region16: #{_forward_impl.1} parent=1 // pred_region
      _
    $region17: #{_forward_impl.1} parent=1 // pred_fallthru
      _
    // Predicated region
    $region18: #{_forward_impl.1} parent=1 // pred_check
      _
    $region19: #{_forward_impl.1} parent=1 // pred_check_branch
      %25 = sbr.rel (0) target = $region21
    $region20: #{_forward_impl.1} parent=1 // pred_region
      %s27 = ssub.s32 8192, 8192
      %28 = vsyncadd [#allocation3], %s27
      %s29 = sshll.u32 [#allocation2], 4
      %s30 = int_to_ptr.vmem [resolvable:$true] %s29
      %35 = dma.hbm_to_vmem [thread:$0]  %s4, 8192, %s30, [#allocation3], 128, 128, 8
    $region21: #{_forward_impl.1} parent=1 // pred_fallthru
      _
    // Predicated region
    $region22: #{_forward_impl.1} parent=1 // pred_check
      _
    $region23: #{_forward_impl.1} parent=1 // pred_check_branch
      %37 = sbr.rel (0) target = $region25
    $region24: #{_forward_impl.1} parent=1 // pred_region
      _
    $region25: #{_forward_impl.1} parent=1 // pred_fallthru
      _
    // Predicated region
    $region26: #{_forward_impl.1} parent=1 // pred_check
      _
    $region27: #{_forward_impl.1} parent=1 // pred_check_branch
      %39 = sbr.rel (0) target = $region29
    $region28: #{_forward_impl.1} parent=1 // pred_region
      %40 = dma.done [#allocation3], 8192
    $region29: #{_forward_impl.1} parent=1 // pred_fallthru
      _
    %v41 = vld [vmem:[%s2] sm:$0xff]
    %v42 = vld [vmem:[%s2 + $0x8] sm:$0xff]
    %v43 = vld [vmem:[%s3] sm:$0xff]
    %v44 = vld [vmem:[%s3 + $0x8] sm:$0xff]
    %v45 = vld [vmem:[%s0] sm:$0xff]
    %v46 = vld [vmem:[%s0 + $0x8] sm:$0xff]
    %vm47 = vcmask 261120
    %v49 = vsel %vm47, %v45, 0
    %v52 = vsel %vm47, %v46, 0
    %54 = vmatprep.subr.mxu0 0.0
    %55 = vmatpush1.xpose.msra.mxu0 0.0
    %56 = vmatprep.subr.mxu0 0.0
    %57 = vmatpush1.xpose.msra.mxu0 0.0
    %58 = vmatprep.subr.mxu0 0.0
    %59 = vmatpush1.xpose.msra.mxu0 0.0
    %60 = vmatprep.subr.mxu0 0.0
    %61 = vmatpush1.xpose.msra.mxu0 0.0
    %62 = vmatprep.subr.mxu0 0.0
    %63 = vmatpush1.xpose.msra.mxu0 0.0
    %64 = vmatprep.subr.mxu0 0.0
    %65 = vmatpush1.xpose.msra.mxu0 0.0
    %66 = vmatprep.subr.mxu0 0.0
    %67 = vmatpush1.xpose.msra.mxu0 0.0
    %68 = vmatprep.subr.mxu0 0.0
    %69 = vmatpush1.xpose.msra.mxu0 0.0
    %70 = vmatprep.subr.mxu0 0.0
    %71 = vmatpush1.xpose.msra.mxu0 0.0
    %72 = vmatprep.subr.mxu0 0.0
    %73 = vmatpush1.xpose.msra.mxu0 0.0
    %74 = vmatprep.subr.mxu0 0.0
    %75 = vmatpush1.xpose.msra.mxu0 0.0
    %76 = vmatprep.subr.mxu0 0.0
    %77 = vmatpush1.xpose.msra.mxu0 0.0
    %78 = vmatprep.subr.mxu0 0.0
    %79 = vmatpush1.xpose.msra.mxu0 0.0
    %80 = vmatprep.subr.mxu0 0.0
    %81 = vmatpush1.xpose.msra.mxu0 0.0
    %82 = vmatprep.subr.mxu0 0.0
    %83 = vmatpush1.xpose.msra.mxu0 %v52
    %84 = vmatprep.subr.mxu0 0.0
    %85 = vmatpush1.xpose.msra.mxu0 %v49
    %86 = vmatprep.subr.mxu0 0.0
    %87 = vmatpush2.xpose.msra.mxu0 0.0
    %88 = vmatprep.subr.mxu0 0.0
    %89 = vmatpush2.xpose.msra.mxu0 0.0
    %90 = vmatprep.subr.mxu0 0.0
    %91 = vmatpush2.xpose.msra.mxu0 0.0
    %92 = vmatprep.subr.mxu0 0.0
    %93 = vmatpush2.xpose.msra.mxu0 0.0
    %94 = vmatprep.subr.mxu0 0.0
    %95 = vmatpush2.xpose.msra.mxu0 0.0
    %96 = vmatprep.subr.mxu0 0.0
    %97 = vmatpush2.xpose.msra.mxu0 0.0
    %98 = vmatprep.subr.mxu0 0.0
    %99 = vmatpush2.xpose.msra.mxu0 0.0
    %100 = vmatprep.subr.mxu0 0.0
    %101 = vmatpush2.xpose.msra.mxu0 0.0
    %102 = vmatprep.subr.mxu0 0.0
    %103 = vmatpush2.xpose.msra.mxu0 0.0
    %104 = vmatprep.subr.mxu0 0.0
    %105 = vmatpush2.xpose.msra.mxu0 0.0
    %106 = vmatprep.subr.mxu0 0.0
    %107 = vmatpush2.xpose.msra.mxu0 0.0
    %108 = vmatprep.subr.mxu0 0.0
    %109 = vmatpush2.xpose.msra.mxu0 0.0
    %110 = vmatprep.subr.mxu0 0.0
    %111 = vmatpush2.xpose.msra.mxu0 0.0
    %112 = vmatprep.subr.mxu0 0.0
    %113 = vmatpush2.xpose.msra.mxu0 0.0
    %114 = vmatprep.subr.mxu0 0.0
    %115 = vmatpush2.xpose.msra.mxu0 0.0
    %116 = vmatprep.subr.mxu0 0.0
    %117 = vmatpush2.xpose.msra.mxu0 0.0
    %118 = vmatprep.mubr.f32.mxu0 0.0
    %119 = vmatmul.mubr.f32.gmra.mxu0 %v49
    %v120 = vpop.f32.mrf.mxu0
    %v121 = vadd.f32 0.0, %v120
    %v122 = vpop.f32.mrf.mxu0
    %123 = vmatprep.mubr.f32.mxu0 0.0
    %124 = vmatmul.mubr.f32.gmra.mxu0 %v52
    %v125 = vpop.f32.mrf.mxu0
    %v126 = vadd.f32 0.0, %v125
    %v127 = vpop.f32.mrf.mxu0
    %128 = vdwg.mxu0
    %vm129 = vcmask 130048
    %v131 = vsel %vm129, %v121, 0
    %v134 = vsel %vm129, %v126, 0
    %136 = vmatprep.subr.mxu0 0.0
    %137 = vmatpush1.msra.mxu0 0.0
    %138 = vmatprep.subr.mxu0 0.0
    %139 = vmatpush1.msra.mxu0 0.0
    %140 = vmatprep.subr.mxu0 0.0
    %141 = vmatpush1.msra.mxu0 0.0
    %142 = vmatprep.subr.mxu0 0.0
    %143 = vmatpush1.msra.mxu0 0.0
    %144 = vmatprep.subr.mxu0 0.0
    %145 = vmatpush1.msra.mxu0 0.0
    %146 = vmatprep.subr.mxu0 0.0
    %147 = vmatpush1.msra.mxu0 0.0
    %148 = vmatprep.subr.mxu0 0.0
    %149 = vmatpush1.msra.mxu0 0.0
    %150 = vmatprep.subr.mxu0 0.0
    %151 = vmatpush1.msra.mxu0 0.0
    %152 = vmatprep.subr.mxu0 0.0
    %153 = vmatpush1.msra.mxu0 0.0
    %154 = vmatprep.subr.mxu0 0.0
    %155 = vmatpush1.msra.mxu0 0.0
    %156 = vmatprep.subr.mxu0 0.0
    %157 = vmatpush1.msra.mxu0 0.0
    %158 = vmatprep.subr.mxu0 0.0
    %159 = vmatpush1.msra.mxu0 0.0
    %160 = vmatprep.subr.mxu0 0.0
    %161 = vmatpush1.msra.mxu0 0.0
    %162 = vmatprep.subr.mxu0 0.0
    %163 = vmatpush1.msra.mxu0 0.0
    %164 = vmatprep.subr.mxu0 0.0
    %165 = vmatpush1.msra.mxu0 %v42
    %166 = vmatprep.subr.mxu0 0.0
    %167 = vmatpush1.msra.mxu0 %v41
    %168 = vmatprep.subr.mxu0 0.0
    %169 = vmatpush2.msra.mxu0 0.0
    %170 = vmatprep.subr.mxu0 0.0
    %171 = vmatpush2.msra.mxu0 0.0
    %172 = vmatprep.subr.mxu0 0.0
    %173 = vmatpush2.msra.mxu0 0.0
    %174 = vmatprep.subr.mxu0 0.0
    %175 = vmatpush2.msra.mxu0 0.0
    %176 = vmatprep.subr.mxu0 0.0
    %177 = vmatpush2.msra.mxu0 0.0
    %178 = vmatprep.subr.mxu0 0.0
    %179 = vmatpush2.msra.mxu0 0.0
    %180 = vmatprep.subr.mxu0 0.0
    %181 = vmatpush2.msra.mxu0 0.0
    %182 = vmatprep.subr.mxu0 0.0
    %183 = vmatpush2.msra.mxu0 0.0
    %184 = vmatprep.subr.mxu0 0.0
    %185 = vmatpush2.msra.mxu0 0.0
    %186 = vmatprep.subr.mxu0 0.0
    %187 = vmatpush2.msra.mxu0 0.0
    %188 = vmatprep.subr.mxu0 0.0
    %189 = vmatpush2.msra.mxu0 0.0
    %190 = vmatprep.subr.mxu0 0.0
    %191 = vmatpush2.msra.mxu0 0.0
    %192 = vmatprep.subr.mxu0 0.0
    %193 = vmatpush2.msra.mxu0 0.0
    %194 = vmatprep.subr.mxu0 0.0
    %195 = vmatpush2.msra.mxu0 0.0
    %196 = vmatprep.subr.mxu0 0.0
    %197 = vmatpush2.msra.mxu0 0.0
    %198 = vmatprep.subr.mxu0 0.0
    %199 = vmatpush2.msra.mxu0 0.0
    %200 = vmatprep.mubr.f32.mxu0 0.0
    %201 = vmatmul.mubr.f32.gmra.mxu0 %v131
    %v202 = vpop.f32.mrf.mxu0
    %v203 = vadd.f32 0.0, %v202
    %v204 = vpop.f32.mrf.mxu0
    %205 = vmatprep.mubr.f32.mxu0 0.0
    %206 = vmatmul.mubr.f32.gmra.mxu0 %v134
    %v207 = vpop.f32.mrf.mxu0
    %v208 = vadd.f32 0.0, %v207
    %v209 = vpop.f32.mrf.mxu0
    %210 = vdwg.mxu0
    %v211 = vmul.f32 %v203, %v43
    %v212 = vmul.f32 %v208, %v44
    %v213 = vadd.f32 %v211, %v212
    %v214 = vrot.slane %v213, 4
    %v215 = vadd.f32 %v213, %v214
    %v216 = vrot.slane %v215, 2
    %v217 = vadd.f32 %v215, %v216
    %v218 = vrot.slane %v217, 1
    %v219 = vadd.f32 %v217, %v218
    %220 = vst [vmem:[#allocation5] sm:$0x1] %v219
    %s221 = scalar_lea.vmem %s0, 16
    %v222 = vld [vmem:[%s221] sm:$0xff]
    %v223 = vld [vmem:[%s221 + $0x8] sm:$0xff]
    %v225 = vsel %vm47, %v222, 0
    %v228 = vsel %vm47, %v223, 0
    %230 = vmatprep.subr.mxu0 0.0
    %231 = vmatpush1.xpose.msra.mxu0 0.0
    %232 = vmatprep.subr.mxu0 0.0
    %233 = vmatpush1.xpose.msra.mxu0 0.0
    %234 = vmatprep.subr.mxu0 0.0
    %235 = vmatpush1.xpose.msra.mxu0 0.0
    %236 = vmatprep.subr.mxu0 0.0
    %237 = vmatpush1.xpose.msra.mxu0 0.0
    %238 = vmatprep.subr.mxu0 0.0
    %239 = vmatpush1.xpose.msra.mxu0 0.0
    %240 = vmatprep.subr.mxu0 0.0
    %241 = vmatpush1.xpose.msra.mxu0 0.0
    %242 = vmatprep.subr.mxu0 0.0
    %243 = vmatpush1.xpose.msra.mxu0 0.0
    %244 = vmatprep.subr.mxu0 0.0
    %245 = vmatpush1.xpose.msra.mxu0 0.0
    %246 = vmatprep.subr.mxu0 0.0
    %247 = vmatpush1.xpose.msra.mxu0 0.0
    %248 = vmatprep.subr.mxu0 0.0
    %249 = vmatpush1.xpose.msra.mxu0 0.0
    %250 = vmatprep.subr.mxu0 0.0
    %251 = vmatpush1.xpose.msra.mxu0 0.0
    %252 = vmatprep.subr.mxu0 0.0
    %253 = vmatpush1.xpose.msra.mxu0 0.0
    %254 = vmatprep.subr.mxu0 0.0
    %255 = vmatpush1.xpose.msra.mxu0 0.0
    %256 = vmatprep.subr.mxu0 0.0
    %257 = vmatpush1.xpose.msra.mxu0 0.0
    %258 = vmatprep.subr.mxu0 0.0
    %259 = vmatpush1.xpose.msra.mxu0 %v228
    %260 = vmatprep.subr.mxu0 0.0
    %261 = vmatpush1.xpose.msra.mxu0 %v225
    %262 = vmatprep.subr.mxu0 0.0
    %263 = vmatpush2.xpose.msra.mxu0 0.0
    %264 = vmatprep.subr.mxu0 0.0
    %265 = vmatpush2.xpose.msra.mxu0 0.0
    %266 = vmatprep.subr.mxu0 0.0
    %267 = vmatpush2.xpose.msra.mxu0 0.0
    %268 = vmatprep.subr.mxu0 0.0
    %269 = vmatpush2.xpose.msra.mxu0 0.0
    %270 = vmatprep.subr.mxu0 0.0
    %271 = vmatpush2.xpose.msra.mxu0 0.0
    %272 = vmatprep.subr.mxu0 0.0
    %273 = vmatpush2.xpose.msra.mxu0 0.0
    %274 = vmatprep.subr.mxu0 0.0
    %275 = vmatpush2.xpose.msra.mxu0 0.0
    %276 = vmatprep.subr.mxu0 0.0
    %277 = vmatpush2.xpose.msra.mxu0 0.0
    %278 = vmatprep.subr.mxu0 0.0
    %279 = vmatpush2.xpose.msra.mxu0 0.0
    %280 = vmatprep.subr.mxu0 0.0
    %281 = vmatpush2.xpose.msra.mxu0 0.0
    %282 = vmatprep.subr.mxu0 0.0
    %283 = vmatpush2.xpose.msra.mxu0 0.0
    %284 = vmatprep.subr.mxu0 0.0
    %285 = vmatpush2.xpose.msra.mxu0 0.0
    %286 = vmatprep.subr.mxu0 0.0
    %287 = vmatpush2.xpose.msra.mxu0 0.0
    %288 = vmatprep.subr.mxu0 0.0
    %289 = vmatpush2.xpose.msra.mxu0 0.0
    %290 = vmatprep.subr.mxu0 0.0
    %291 = vmatpush2.xpose.msra.mxu0 0.0
    %292 = vmatprep.subr.mxu0 0.0
    %293 = vmatpush2.xpose.msra.mxu0 0.0
    %294 = vmatprep.mubr.f32.mxu0 0.0
    %295 = vmatmul.mubr.f32.gmra.mxu0 %v225
    %v296 = vpop.f32.mrf.mxu0
    %v297 = vadd.f32 0.0, %v296
    %v298 = vpop.f32.mrf.mxu0
    %299 = vmatprep.mubr.f32.mxu0 0.0
    %300 = vmatmul.mubr.f32.gmra.mxu0 %v228
    %v301 = vpop.f32.mrf.mxu0
    %v302 = vadd.f32 0.0, %v301
    %v303 = vpop.f32.mrf.mxu0
    %304 = vdwg.mxu0
    %v306 = vsel %vm129, %v297, 0
    %v309 = vsel %vm129, %v302, 0
    %311 = vmatprep.subr.mxu0 0.0
    %312 = vmatpush1.msra.mxu0 0.0
    %313 = vmatprep.subr.mxu0 0.0
    %314 = vmatpush1.msra.mxu0 0.0
    %315 = vmatprep.subr.mxu0 0.0
    %316 = vmatpush1.msra.mxu0 0.0
    %317 = vmatprep.subr.mxu0 0.0
    %318 = vmatpush1.msra.mxu0 0.0
    %319 = vmatprep.subr.mxu0 0.0
    %320 = vmatpush1.msra.mxu0 0.0
    %321 = vmatprep.subr.mxu0 0.0
    %322 = vmatpush1.msra.mxu0 0.0
    %323 = vmatprep.subr.mxu0 0.0
    %324 = vmatpush1.msra.mxu0 0.0
    %325 = vmatprep.subr.mxu0 0.0
    %326 = vmatpush1.msra.mxu0 0.0
    %327 = vmatprep.subr.mxu0 0.0
    %328 = vmatpush1.msra.mxu0 0.0
    %329 = vmatprep.subr.mxu0 0.0
    %330 = vmatpush1.msra.mxu0 0.0
    %331 = vmatprep.subr.mxu0 0.0
    %332 = vmatpush1.msra.mxu0 0.0
    %333 = vmatprep.subr.mxu0 0.0
    %334 = vmatpush1.msra.mxu0 0.0
    %335 = vmatprep.subr.mxu0 0.0
    %336 = vmatpush1.msra.mxu0 0.0
    %337 = vmatprep.subr.mxu0 0.0
    %338 = vmatpush1.msra.mxu0 0.0
    %339 = vmatprep.subr.mxu0 0.0
    %340 = vmatpush1.msra.mxu0 %v42
    %341 = vmatprep.subr.mxu0 0.0
    %342 = vmatpush1.msra.mxu0 %v41
    %343 = vmatprep.subr.mxu0 0.0
    %344 = vmatpush2.msra.mxu0 0.0
    %345 = vmatprep.subr.mxu0 0.0
    %346 = vmatpush2.msra.mxu0 0.0
    %347 = vmatprep.subr.mxu0 0.0
    %348 = vmatpush2.msra.mxu0 0.0
    %349 = vmatprep.subr.mxu0 0.0
    %350 = vmatpush2.msra.mxu0 0.0
    %351 = vmatprep.subr.mxu0 0.0
    %352 = vmatpush2.msra.mxu0 0.0
    %353 = vmatprep.subr.mxu0 0.0
    %354 = vmatpush2.msra.mxu0 0.0
    %355 = vmatprep.subr.mxu0 0.0
    %356 = vmatpush2.msra.mxu0 0.0
    %357 = vmatprep.subr.mxu0 0.0
    %358 = vmatpush2.msra.mxu0 0.0
    %359 = vmatprep.subr.mxu0 0.0
    %360 = vmatpush2.msra.mxu0 0.0
    %361 = vmatprep.subr.mxu0 0.0
    %362 = vmatpush2.msra.mxu0 0.0
    %363 = vmatprep.subr.mxu0 0.0
    %364 = vmatpush2.msra.mxu0 0.0
    %365 = vmatprep.subr.mxu0 0.0
    %366 = vmatpush2.msra.mxu0 0.0
    %367 = vmatprep.subr.mxu0 0.0
    %368 = vmatpush2.msra.mxu0 0.0
    %369 = vmatprep.subr.mxu0 0.0
    %370 = vmatpush2.msra.mxu0 0.0
    %371 = vmatprep.subr.mxu0 0.0
    %372 = vmatpush2.msra.mxu0 0.0
    %373 = vmatprep.subr.mxu0 0.0
    %374 = vmatpush2.msra.mxu0 0.0
    %375 = vmatprep.mubr.f32.mxu0 0.0
    %376 = vmatmul.mubr.f32.gmra.mxu0 %v306
    %v377 = vpop.f32.mrf.mxu0
    %v378 = vadd.f32 0.0, %v377
    %v379 = vpop.f32.mrf.mxu0
    %380 = vmatprep.mubr.f32.mxu0 0.0
    %381 = vmatmul.mubr.f32.gmra.mxu0 %v309
    %v382 = vpop.f32.mrf.mxu0
    %v383 = vadd.f32 0.0, %v382
    %v384 = vpop.f32.mrf.mxu0
    %385 = vdwg.mxu0
    %v386 = vmul.f32 %v378, %v43
    %v387 = vmul.f32 %v383, %v44
    %v388 = vadd.f32 %v386, %v387
    %v389 = vrot.slane %v388, 4
    %v390 = vadd.f32 %v388, %v389
    %v391 = vrot.slane %v390, 2
    %v392 = vadd.f32 %v390, %v391
    %v393 = vrot.slane %v392, 1
    %v394 = vadd.f32 %v392, %v393
    %395 = vst [vmem:[#allocation5 + $0x1] sm:$0x1] %v394
    %v396 = vld [vmem:[%s1] sm:$0xff]
    %v397 = vld [vmem:[#allocation2] sm:$0xff]
    %v398 = vld [vmem:[#allocation2 + $0x8] sm:$0xff]
    %v399 = vld [vmem:[#allocation2 + $0x10] sm:$0xff]
    %v400 = vld [vmem:[#allocation2 + $0x18] sm:$0xff]
    %v401 = vld [vmem:[#allocation2 + $0x20] sm:$0xff]
    %v402 = vld [vmem:[#allocation2 + $0x28] sm:$0xff]
    %v403 = vld [vmem:[#allocation2 + $0x30] sm:$0xff]
    %v404 = vld [vmem:[#allocation2 + $0x38] sm:$0xff]
    %v405 = vld [vmem:[#allocation2 + $0x40] sm:$0xff]
    %v406 = vld [vmem:[#allocation2 + $0x48] sm:$0xff]
    %v407 = vld [vmem:[#allocation2 + $0x50] sm:$0xff]
    %v408 = vld [vmem:[#allocation2 + $0x58] sm:$0xff]
    %v409 = vld [vmem:[#allocation2 + $0x60] sm:$0xff]
    %v410 = vld [vmem:[#allocation2 + $0x68] sm:$0xff]
    %v411 = vld [vmem:[#allocation2 + $0x70] sm:$0xff]
    %v412 = vld [vmem:[#allocation2 + $0x78] sm:$0xff]
    %v413 = vld [vmem:[#allocation2 + $0x80] sm:$0xff]
    %v414 = vld [vmem:[#allocation2 + $0x88] sm:$0xff]
    %v415 = vld [vmem:[#allocation2 + $0x90] sm:$0xff]
    %v416 = vld [vmem:[#allocation2 + $0x98] sm:$0xff]
    %v417 = vld [vmem:[#allocation2 + $0xa0] sm:$0xff]
    %v418 = vld [vmem:[#allocation2 + $0xa8] sm:$0xff]
    %v419 = vld [vmem:[#allocation2 + $0xb0] sm:$0xff]
    %v420 = vld [vmem:[#allocation2 + $0xb8] sm:$0xff]
    %v421 = vld [vmem:[#allocation2 + $0xc0] sm:$0xff]
    %v422 = vld [vmem:[#allocation2 + $0xc8] sm:$0xff]
    %v423 = vld [vmem:[#allocation2 + $0xd0] sm:$0xff]
    %v424 = vld [vmem:[#allocation2 + $0xd8] sm:$0xff]
    %v425 = vld [vmem:[#allocation2 + $0xe0] sm:$0xff]
    %v426 = vld [vmem:[#allocation2 + $0xe8] sm:$0xff]
    %v427 = vld [vmem:[#allocation2 + $0xf0] sm:$0xff]
    %v428 = vld [vmem:[#allocation2 + $0xf8] sm:$0xff]
    %v429 = vld [vmem:[#allocation2 + $0x100] sm:$0xff]
    %v430 = vld [vmem:[#allocation2 + $0x108] sm:$0xff]
    %v431 = vld [vmem:[#allocation2 + $0x110] sm:$0xff]
    %v432 = vld [vmem:[#allocation2 + $0x118] sm:$0xff]
    %v433 = vld [vmem:[#allocation2 + $0x120] sm:$0xff]
    %v434 = vld [vmem:[#allocation2 + $0x128] sm:$0xff]
    %v435 = vld [vmem:[#allocation2 + $0x130] sm:$0xff]
    %v436 = vld [vmem:[#allocation2 + $0x138] sm:$0xff]
    %v437 = vld [vmem:[#allocation2 + $0x140] sm:$0xff]
    %v438 = vld [vmem:[#allocation2 + $0x148] sm:$0xff]
    %v439 = vld [vmem:[#allocation2 + $0x150] sm:$0xff]
    %v440 = vld [vmem:[#allocation2 + $0x158] sm:$0xff]
    %v441 = vld [vmem:[#allocation2 + $0x160] sm:$0xff]
    %v442 = vld [vmem:[#allocation2 + $0x168] sm:$0xff]
    %v443 = vld [vmem:[#allocation2 + $0x170] sm:$0xff]
    %v444 = vld [vmem:[#allocation2 + $0x178] sm:$0xff]
    %v445 = vld [vmem:[#allocation2 + $0x180] sm:$0xff]
    %v446 = vld [vmem:[#allocation2 + $0x188] sm:$0xff]
    %v447 = vld [vmem:[#allocation2 + $0x190] sm:$0xff]
    %v448 = vld [vmem:[#allocation2 + $0x198] sm:$0xff]
    %v449 = vld [vmem:[#allocation2 + $0x1a0] sm:$0xff]
    %v450 = vld [vmem:[#allocation2 + $0x1a8] sm:$0xff]
    %v451 = vld [vmem:[#allocation2 + $0x1b0] sm:$0xff]
    %v452 = vld [vmem:[#allocation2 + $0x1b8] sm:$0xff]
    %v453 = vld [vmem:[#allocation2 + $0x1c0] sm:$0xff]
    %v454 = vld [vmem:[#allocation2 + $0x1c8] sm:$0xff]
    %v455 = vld [vmem:[#allocation2 + $0x1d0] sm:$0xff]
    %v456 = vld [vmem:[#allocation2 + $0x1d8] sm:$0xff]
    %v457 = vld [vmem:[#allocation2 + $0x1e0] sm:$0xff]
    %v458 = vld [vmem:[#allocation2 + $0x1e8] sm:$0xff]
    %v459 = vld [vmem:[#allocation2 + $0x1f0] sm:$0xff]
    %v460 = vld [vmem:[#allocation2 + $0x1f8] sm:$0xff]
    %v461 = vld [vmem:[%s5] sm:$0x1]
    %v463 = vlaneseq
    %v464 = vshrl.u32 %v463, 7
    %v465 = vsub.s32 0, %v464
    %v466 = vrot.slane %v461, %v465
    %v469 = vcombine.high %v396, %v396
    %v471 = vunpack.c.l.s4 1983009808
    %v472 = vunpack.c.0.s8 %v471
    %v473 = vlaneseq
    %v474 = vshrl.u32 %v473, 7
    %v475 = vsub.s32 %v472, %v474
    %v476 = vrot.slane %v396, %v475
    %v478 = vunpack.c.l.s4 1983009808
    %v479 = vunpack.c.0.s8 %v478
    %v480 = vlaneseq
    %v481 = vshrl.u32 %v480, 7
    %v482 = vsub.s32 %v479, %v481
    %v483 = vrot.slane %v469, %v482
    %v484 = vcombine.high %v476, %v476
    %v485 = vcombine.high %v483, %v483
    %490 = vmatprep.subr.mxu0 0.0
    %491 = vmatpush1.msra.mxu0 %v412
    %492 = vmatprep.subr.mxu0 0.0
    %493 = vmatpush1.msra.mxu0 %v411
    %494 = vmatprep.subr.mxu0 0.0
    %495 = vmatpush1.msra.mxu0 %v410
    %496 = vmatprep.subr.mxu0 0.0
    %497 = vmatpush1.msra.mxu0 %v409
    %498 = vmatprep.subr.mxu0 0.0
    %499 = vmatpush1.msra.mxu0 %v408
    %500 = vmatprep.subr.mxu0 0.0
    %501 = vmatpush1.msra.mxu0 %v407
    %502 = vmatprep.subr.mxu0 0.0
    %503 = vmatpush1.msra.mxu0 %v406
    %504 = vmatprep.subr.mxu0 0.0
    %505 = vmatpush1.msra.mxu0 %v405
    %506 = vmatprep.subr.mxu0 0.0
    %507 = vmatpush1.msra.mxu0 %v404
    %508 = vmatprep.subr.mxu0 0.0
    %509 = vmatpush1.msra.mxu0 %v403
    %510 = vmatprep.subr.mxu0 0.0
    %511 = vmatpush1.msra.mxu0 %v402
    %512 = vmatprep.subr.mxu0 0.0
    %513 = vmatpush1.msra.mxu0 %v401
    %514 = vmatprep.subr.mxu0 0.0
    %515 = vmatpush1.msra.mxu0 %v400
    %516 = vmatprep.subr.mxu0 0.0
    %517 = vmatpush1.msra.mxu0 %v399
    %518 = vmatprep.subr.mxu0 0.0
    %519 = vmatpush1.msra.mxu0 %v398
    %520 = vmatprep.subr.mxu0 0.0
    %521 = vmatpush1.msra.mxu0 %v397
    %522 = vmatprep.subr.mxu0 0.0
    %523 = vmatpush2.msra.mxu0 %v428
    %524 = vmatprep.subr.mxu0 0.0
    %525 = vmatpush2.msra.mxu0 %v427
    %526 = vmatprep.subr.mxu0 0.0
    %527 = vmatpush2.msra.mxu0 %v426
    %528 = vmatprep.subr.mxu0 0.0
    %529 = vmatpush2.msra.mxu0 %v425
    %530 = vmatprep.subr.mxu0 0.0
    %531 = vmatpush2.msra.mxu0 %v424
    %532 = vmatprep.subr.mxu0 0.0
    %533 = vmatpush2.msra.mxu0 %v423
    %534 = vmatprep.subr.mxu0 0.0
    %535 = vmatpush2.msra.mxu0 %v422
    %536 = vmatprep.subr.mxu0 0.0
    %537 = vmatpush2.msra.mxu0 %v421
    %538 = vmatprep.subr.mxu0 0.0
    %539 = vmatpush2.msra.mxu0 %v420
    %540 = vmatprep.subr.mxu0 0.0
    %541 = vmatpush2.msra.mxu0 %v419
    %542 = vmatprep.subr.mxu0 0.0
    %543 = vmatpush2.msra.mxu0 %v418
    %544 = vmatprep.subr.mxu0 0.0
    %545 = vmatpush2.msra.mxu0 %v417
    %546 = vmatprep.subr.mxu0 0.0
    %547 = vmatpush2.msra.mxu0 %v416
    %548 = vmatprep.subr.mxu0 0.0
    %549 = vmatpush2.msra.mxu0 %v415
    %550 = vmatprep.subr.mxu0 0.0
    %551 = vmatpush2.msra.mxu0 %v414
    %552 = vmatprep.subr.mxu0 0.0
    %553 = vmatpush2.msra.mxu0 %v413
    %554 = vmatprep.mubr.f32.mxu0 %v484
    %555 = vmatmul.mubr.f32.gmra.mxu0 %v476
    %v556 = vpop.f32.mrf.mxu0
    %v557 = vadd.f32 %v466, %v556
    %v558 = vpop.f32.mrf.mxu0
    %559 = vdwg.mxu0
    %560 = vmatprep.subr.mxu0 0.0
    %561 = vmatpush1.msra.mxu0 %v444
    %562 = vmatprep.subr.mxu0 0.0
    %563 = vmatpush1.msra.mxu0 %v443
    %564 = vmatprep.subr.mxu0 0.0
    %565 = vmatpush1.msra.mxu0 %v442
    %566 = vmatprep.subr.mxu0 0.0
    %567 = vmatpush1.msra.mxu0 %v441
    %568 = vmatprep.subr.mxu0 0.0
    %569 = vmatpush1.msra.mxu0 %v440
    %570 = vmatprep.subr.mxu0 0.0
    %571 = vmatpush1.msra.mxu0 %v439
    %572 = vmatprep.subr.mxu0 0.0
    %573 = vmatpush1.msra.mxu0 %v438
    %574 = vmatprep.subr.mxu0 0.0
    %575 = vmatpush1.msra.mxu0 %v437
    %576 = vmatprep.subr.mxu0 0.0
    %577 = vmatpush1.msra.mxu0 %v436
    %578 = vmatprep.subr.mxu0 0.0
    %579 = vmatpush1.msra.mxu0 %v435
    %580 = vmatprep.subr.mxu0 0.0
    %581 = vmatpush1.msra.mxu0 %v434
    %582 = vmatprep.subr.mxu0 0.0
    %583 = vmatpush1.msra.mxu0 %v433
    %584 = vmatprep.subr.mxu0 0.0
    %585 = vmatpush1.msra.mxu0 %v432
    %586 = vmatprep.subr.mxu0 0.0
    %587 = vmatpush1.msra.mxu0 %v431
    %588 = vmatprep.subr.mxu0 0.0
    %589 = vmatpush1.msra.mxu0 %v430
    %590 = vmatprep.subr.mxu0 0.0
    %591 = vmatpush1.msra.mxu0 %v429
    %592 = vmatprep.subr.mxu0 0.0
    %593 = vmatpush2.msra.mxu0 %v460
    %594 = vmatprep.subr.mxu0 0.0
    %595 = vmatpush2.msra.mxu0 %v459
    %596 = vmatprep.subr.mxu0 0.0
    %597 = vmatpush2.msra.mxu0 %v458
    %598 = vmatprep.subr.mxu0 0.0
    %599 = vmatpush2.msra.mxu0 %v457
    %600 = vmatprep.subr.mxu0 0.0
    %601 = vmatpush2.msra.mxu0 %v456
    %602 = vmatprep.subr.mxu0 0.0
    %603 = vmatpush2.msra.mxu0 %v455
    %604 = vmatprep.subr.mxu0 0.0
    %605 = vmatpush2.msra.mxu0 %v454
    %606 = vmatprep.subr.mxu0 0.0
    %607 = vmatpush2.msra.mxu0 %v453
    %608 = vmatprep.subr.mxu0 0.0
    %609 = vmatpush2.msra.mxu0 %v452
    %610 = vmatprep.subr.mxu0 0.0
    %611 = vmatpush2.msra.mxu0 %v451
    %612 = vmatprep.subr.mxu0 0.0
    %613 = vmatpush2.msra.mxu0 %v450
    %614 = vmatprep.subr.mxu0 0.0
    %615 = vmatpush2.msra.mxu0 %v449
    %616 = vmatprep.subr.mxu0 0.0
    %617 = vmatpush2.msra.mxu0 %v448
    %618 = vmatprep.subr.mxu0 0.0
    %619 = vmatpush2.msra.mxu0 %v447
    %620 = vmatprep.subr.mxu0 0.0
    %621 = vmatpush2.msra.mxu0 %v446
    %622 = vmatprep.subr.mxu0 0.0
    %623 = vmatpush2.msra.mxu0 %v445
    %624 = vmatprep.mubr.f32.mxu0 %v485
    %625 = vmatmul.mubr.f32.gmra.mxu0 %v483
    %v626 = vpop.f32.mrf.mxu0
    %v627 = vadd.f32 %v557, %v626
    %v628 = vpop.f32.mrf.mxu0
    %629 = vdwg.mxu0
    %v630 = vmax.f32 %v627, 0.0
    %631 = vst [vmem:[#allocation6] sm:$0x3] %v630
    // Predicated region
    $region30: #{_forward_impl.1} parent=1 // pred_check
      _
    $region31: #{_forward_impl.1} parent=1 // pred_check_branch
      %633 = sbr.rel (0) target = $region33
    $region32: #{_forward_impl.1} parent=1 // pred_region
      %s635 = ssub.s32 32, 32
      %636 = vsyncadd [#allocation4], %s635
      %s638 = sshll.u32 [#allocation5], 4
      %s639 = int_to_ptr.vmem [resolvable:$true] %s638
      %641 = dma.vmem_to_hbm [thread:$0]  %s639, 32, %s6, [#allocation4]
    $region33: #{_forward_impl.1} parent=1 // pred_fallthru
      _
    // Predicated region
    $region34: #{_forward_impl.1} parent=1 // pred_check
      _
    $region35: #{_forward_impl.1} parent=1 // pred_check_branch
      %643 = sbr.rel (0) target = $region37
    $region36: #{_forward_impl.1} parent=1 // pred_region
      %s645 = ssub.s32 32, 32
      %646 = vsyncadd [#allocation7], %s645
      %s648 = sshll.u32 [#allocation6], 4
      %s649 = int_to_ptr.vmem [resolvable:$true] %s648
      %651 = dma.vmem_to_hbm [thread:$0]  %s649, 32, %s7, [#allocation7]
    $region37: #{_forward_impl.1} parent=1 // pred_fallthru
      _
    // Predicated region
    $region38: #{_forward_impl.1} parent=1 // pred_check
      _
    $region39: #{_forward_impl.1} parent=1 // pred_check_branch
      %653 = sbr.rel (0) target = $region41
    $region40: #{_forward_impl.1} parent=1 // pred_region
      %654 = dma.done [#allocation4], 32
    $region41: #{_forward_impl.1} parent=1 // pred_fallthru
      _
    // Predicated region
    $region42: #{_forward_impl.1} parent=1 // pred_check
      _
    $region43: #{_forward_impl.1} parent=1 // pred_check_branch
      %656 = sbr.rel (0) target = $region45
    $region44: #{_forward_impl.1} parent=1 // pred_region
      %657 = dma.done [#allocation7], 32
    $region45: #{_forward_impl.1} parent=1 // pred_fallthru
      _
    %658 = vsyncpa [#allocation3], 1
    %659 = vsyncpa [#allocation4], 1
    %660 = vsyncpa [#allocation7], 1

</llo_original>
